<compile_context>
chip_gen: v7x
topology: tpu7x:2x2x1
jax: 0.10.0
libtpu: 0.0.40
codegen_flags: <defaults>
</compile_context>

<pallas_src>
from functools import partial

import jax
import jax.numpy as jnp
from jax import lax
from jax.experimental import pallas as pl
from jax.experimental.pallas import tpu as pltpu


def _round_up(n: int, m: int) -> int:
    return ((n + m - 1) // m) * m


def _cdiv(a: int, b: int) -> int:
    return -(-a // b)


def value_net_kernel(x_ref, w1_ref, b1_ref, w2_ref, b2_ref, o_ref, *, precision=None):
    # x_ref : (tm, state_dim)     natural layout, batch on sublanes
    # w1_ref: (hidden, state_dim) PyTorch-native (out_features, in_features)
    # b1_ref: (hidden, 1)
    # w2_ref: (hidden, 1)         fc2 weight as a column (for the VPU reduce)
    # b2_ref: (1, 1)
    # o_ref : (1, tm)             lane-dense output tile (batch on lanes)

    # fc1: contract state_dim of W1 with state_dim of x  ->  (hidden, tm).
    # This is a transposed-RHS matmul (same pattern as q @ k^T); no separate
    # wrapper transpose of x is needed.
    h = lax.dot_general(
        w1_ref[...], x_ref[...],
        dimension_numbers=(((1,), (1,)), ((), ())),
        preferred_element_type=jnp.float32,
        precision=precision)
    h = jnp.maximum(h + b1_ref[...], 0.0)                    # bias + ReLU (VPU)

    # fc2: N=1 -> VPU multiply + sublane reduction instead of a 1-row MXU dot.
    v = jnp.sum(h * w2_ref[...], axis=0, keepdims=True)      # (1, tm)
    o_ref[...] = (v + b2_ref[...]).astype(o_ref.dtype)


def _tpu_budget():
    """Return (vmem_capacity_bytes, num_tensorcores_per_device) with safe fallbacks."""
    vmem_cap = 128 * 1024 * 1024
    num_tc = 1
    try:
        info = pltpu.get_tpu_info()
        vmem_cap = int(getattr(info, "vmem_capacity_bytes", vmem_cap))
    except Exception:
        pass
    try:
        kind = jax.devices()[0].device_kind.lower()
        # Only megacore-style parts (2 TensorCores behind one device) gain from
        # force-splitting the "parallel" batch axis.
        if any(tag in kind for tag in ("7", "v4", "v5p")):
            num_tc = 2
    except Exception:
        pass
    return vmem_cap, num_tc


def value_net_forward(x, w1, b1, w2, b2, *, precision=None):
    """x: (B, state_dim); w1: (hidden, state_dim); b1: (hidden,);
    w2: (1, hidden); b2: (1,).  Returns (B, 1), same as the PyTorch forward."""
    B, state_dim = x.shape
    hidden = w1.shape[0]
    itemsize = jnp.dtype(x.dtype).itemsize

    vmem_cap, num_tc = _tpu_budget()
    # Explicit scoped-VMEM limit (v7x: 64 MiB physical; v5e/v6e: 128 MiB).
    vmem_limit = min(int(vmem_cap * 0.75), vmem_cap - (8 << 20))

    # --- lane budget: largest batch tile tm that fits comfortably in VMEM ----
    # Per-lane bytes: double-buffered x tile + (hidden, tm) f32 intermediate
    # + double-buffered (1, tm) output.  Weights counted double-buffered too
    # (conservative, since we did not request Buffered(1)).
    per_lane = 2 * state_dim * itemsize + hidden * 4 + 2 * 4
    weight_bytes = 2 * 4 * (hidden * state_dim + hidden + hidden + 1)
    budget = int(vmem_limit * 0.6)
    tm_max = (budget - weight_bytes) // per_lane
    tm_max = max(128, min(16384, (tm_max // 128) * 128))

    # --- grid: fewest steps that fit VMEM; even split only on 2-TC parts -----
    if B <= tm_max and not (num_tc >= 2 and B >= 256):
        tm, n_steps = B, 1            # single full-extent block: no padding at all
    else:
        n_steps = _cdiv(B, tm_max)
        if num_tc >= 2:
            n_steps = _round_up(max(n_steps, num_tc), num_tc)
        tm = min(_round_up(_cdiv(B, n_steps), 128), tm_max)   # minimal overshoot
        n_steps = _cdiv(B, tm)
        if num_tc >= 2 and n_steps > 1:
            n_steps = _round_up(n_steps, num_tc)               # no idle TC on last wave

    # Tiny, layout-only reshapes of the bias/weight vectors (a few KiB at most).
    b1_2d = b1.reshape(hidden, 1)
    w2_col = w2.reshape(hidden, 1)
    b2_2d = b2.reshape(1, 1)

    cost = pl.CostEstimate(
        flops=2 * n_steps * tm * (state_dim * hidden + hidden),
        transcendentals=0,
        bytes_accessed=(B * state_dim + B) * itemsize
        + int(w1.size + b1.size + w2.size + b2.size) * itemsize,
    )

    out = pl.pallas_call(
        partial(value_net_kernel, precision=precision),
        out_shape=jax.ShapeDtypeStruct((1, B), x.dtype),
        grid_spec=pltpu.PrefetchScalarGridSpec(
            num_scalar_prefetch=0,
            grid=(n_steps,),
            in_specs=[
                pl.BlockSpec((tm, state_dim), lambda i: (i, 0)),      # x tile, natural layout
                pl.BlockSpec((hidden, state_dim), lambda i: (0, 0)),  # W1 (VMEM-resident)
                pl.BlockSpec((hidden, 1), lambda i: (0, 0)),          # b1
                pl.BlockSpec((hidden, 1), lambda i: (0, 0)),          # W2 column
                pl.BlockSpec((1, 1), lambda i: (0, 0)),               # b2
            ],
            out_specs=pl.BlockSpec((1, tm), lambda i: (0, i)),        # lane-dense output
        ),
        compiler_params=pltpu.CompilerParams(
            dimension_semantics=("parallel",),
            vmem_limit_bytes=vmem_limit,
        ),
        cost_estimate=cost,
    )(x, w1, b1_2d, w2_col, b2_2d)

    # (1, B) -> (B, 1), matching the PyTorch module's output shape.
    return out.reshape(B, 1)


def init_params(key, state_dim, hidden_dim):
    """Deterministic init mimicking torch.nn.Linear defaults:
    U(-1/sqrt(fan_in), 1/sqrt(fan_in)) for both weight and bias.
    Weights are kept in the PyTorch-native (out_features, in_features) layout."""
    k1, k2, k3, k4 = jax.random.split(key, 4)
    bound1 = 1.0 / jnp.sqrt(state_dim)
    bound2 = 1.0 / jnp.sqrt(hidden_dim)
    w1 = jax.random.uniform(k1, (hidden_dim, state_dim), jnp.float32, -bound1, bound1)
    b1 = jax.random.uniform(k2, (hidden_dim,), jnp.float32, -bound1, bound1)
    w2 = jax.random.uniform(k3, (1, hidden_dim), jnp.float32, -bound2, bound2)
    b2 = jax.random.uniform(k4, (1,), jnp.float32, -bound2, bound2)
    return w1, b1, w2, b2


if __name__ == "__main__":
    B, state_dim, hidden_dim = 8, 16, 32

    key = jax.random.PRNGKey(0)
    kx, kp = jax.random.split(key)
    x = jax.random.normal(kx, (B, state_dim), jnp.float32)

    w1, b1, w2, b2 = init_params(kp, state_dim, hidden_dim)

    out = value_net_forward(x, w1, b1, w2, b2)
    out = jax.block_until_ready(out)

    # Reference check in plain JAX (same math as the PyTorch forward).
    ref = jnp.maximum(x @ w1.T + b1, 0.0) @ w2.T + b2
    assert out.shape == (B, 1)
    assert jnp.allclose(out, ref, atol=1e-5, rtol=1e-5)

    print("KERNEL_OK")
</pallas_src>

<mosaic_0001>
module attributes {stable_mosaic.version = 11 : i64} {
  func.func @value_net_kernel(%arg0: i32, %arg1: memref<8x16xf32, #tpu.memory_space<vmem>>, %arg2: memref<32x16xf32, #tpu.memory_space<vmem>>, %arg3: memref<32x1xf32, #tpu.memory_space<vmem>>, %arg4: memref<32x1xf32, #tpu.memory_space<vmem>>, %arg5: memref<1x1xf32, #tpu.memory_space<vmem>>, %arg6: memref<1x8xf32, #tpu.memory_space<vmem>>) attributes {dimension_semantics = [#tpu.dimension_semantics<parallel>], iteration_bounds = array<i64: 1>, scalar_prefetch = 0 : i64, scratch_operands = 0 : i64, tpu.core_type = #tpu.core_type<tc>, window_params = [{transform_indices = @transform_0, window_bounds = array<i64: 8, 16>}, {pipeline_mode = #tpu.pipeline_mode<synchronous>, transform_indices = @transform_1, window_bounds = array<i64: 32, 16>}, {pipeline_mode = #tpu.pipeline_mode<synchronous>, transform_indices = @transform_2, window_bounds = array<i64: 32, 1>}, {pipeline_mode = #tpu.pipeline_mode<synchronous>, transform_indices = @transform_3, window_bounds = array<i64: 32, 1>}, {pipeline_mode = #tpu.pipeline_mode<synchronous>, transform_indices = @transform_4, window_bounds = array<i64: 1, 1>}, {transform_indices = @transform_5, window_bounds = array<i64: 1, 8>}]} {
    %c0 = arith.constant 0 : index
    %c0_0 = arith.constant 0 : index
    %0 = vector.load %arg2[%c0, %c0_0] : memref<32x16xf32, #tpu.memory_space<vmem>>, vector<32x16xf32>
    %c0_1 = arith.constant 0 : index
    %c0_2 = arith.constant 0 : index
    %1 = vector.load %arg1[%c0_1, %c0_2] : memref<8x16xf32, #tpu.memory_space<vmem>>, vector<8x16xf32>
    %cst = arith.constant dense<0.000000e+00> : vector<32x8xf32>
    %2 = tpu.matmul %0, %1, %cst {dimension_numbers = #tpu.dot_dimension_numbers<[1], [1], [0], [0], [0, 0, 1, 0], [], []>} : vector<32x16xf32>, vector<8x16xf32>, vector<32x8xf32> -> vector<32x8xf32>
    %c0_3 = arith.constant 0 : index
    %c0_4 = arith.constant 0 : index
    %3 = vector.load %arg3[%c0_3, %c0_4] : memref<32x1xf32, #tpu.memory_space<vmem>>, vector<32x1xf32>
    %4 = vector.broadcast %3 : vector<32x1xf32> to vector<32x8xf32>
    %5 = arith.addf %2, %4 : vector<32x8xf32>
    %cst_5 = arith.constant 0.000000e+00 : f32
    %6 = vector.broadcast %cst_5 : f32 to vector<32x8xf32>
    %7 = arith.maximumf %5, %6 : vector<32x8xf32>
    %c0_6 = arith.constant 0 : index
    %c0_7 = arith.constant 0 : index
    %8 = vector.load %arg4[%c0_6, %c0_7] : memref<32x1xf32, #tpu.memory_space<vmem>>, vector<32x1xf32>
    %9 = vector.broadcast %8 : vector<32x1xf32> to vector<32x8xf32>
    %10 = arith.mulf %7, %9 : vector<32x8xf32>
    %cst_8 = arith.constant dense<0.000000e+00> : vector<8xf32>
    %11 = vector.multi_reduction <add>, %10, %cst_8 [0] : vector<32x8xf32> to vector<8xf32>
    %12 = vector.shape_cast %11 : vector<8xf32> to vector<1x8xf32>
    %c0_9 = arith.constant 0 : index
    %c0_10 = arith.constant 0 : index
    %13 = vector.load %arg5[%c0_9, %c0_10] : memref<1x1xf32, #tpu.memory_space<vmem>>, vector<1x1xf32>
    %14 = vector.broadcast %13 : vector<1x1xf32> to vector<1x8xf32>
    %15 = arith.addf %12, %14 : vector<1x8xf32>
    %c0_11 = arith.constant 0 : index
    %c0_12 = arith.constant 0 : index
    %16 = vector.load %arg6[%c0_11, %c0_12] : memref<1x8xf32, #tpu.memory_space<vmem>>, vector<1x8xf32>
    tpu.vector_store %arg6[%c0_11, %c0_12], %15 {strides = array<i32>} : memref<1x8xf32, #tpu.memory_space<vmem>>, vector<1x8xf32>,
    return
  }
  func.func @transform_0(%arg0: i32) -> (i32, i32) {
    %c0_i32 = arith.constant 0 : i32
    %c0_i32_0 = arith.constant 0 : i32
    return %arg0, %c0_i32 : i32, i32
  }
  func.func @transform_1(%arg0: i32) -> (i32, i32) {
    %c0_i32 = arith.constant 0 : i32
    %c0_i32_0 = arith.constant 0 : i32
    %c0_i32_1 = arith.constant 0 : i32
    return %c0_i32, %c0_i32_0 : i32, i32
  }
  func.func @transform_2(%arg0: i32) -> (i32, i32) {
    %c0_i32 = arith.constant 0 : i32
    %c0_i32_0 = arith.constant 0 : i32
    %c0_i32_1 = arith.constant 0 : i32
    return %c0_i32, %c0_i32_0 : i32, i32
  }
  func.func @transform_3(%arg0: i32) -> (i32, i32) {
    %c0_i32 = arith.constant 0 : i32
    %c0_i32_0 = arith.constant 0 : i32
    %c0_i32_1 = arith.constant 0 : i32
    return %c0_i32, %c0_i32_0 : i32, i32
  }
  func.func @transform_4(%arg0: i32) -> (i32, i32) {
    %c0_i32 = arith.constant 0 : i32
    %c0_i32_0 = arith.constant 0 : i32
    %c0_i32_1 = arith.constant 0 : i32
    return %c0_i32, %c0_i32_0 : i32, i32
  }
  func.func @transform_5(%arg0: i32) -> (i32, i32) {
    %c0_i32 = arith.constant 0 : i32
    %c0_i32_0 = arith.constant 0 : i32
    return %c0_i32, %arg0 : i32, i32
  }
}

</mosaic_0001>

<llo_original>
// kernel: tpu_custom_call.1
$region0: #{tpu_custom_call.1}
  #allocation0 [shape = 'u32[]', space=smem, size = 0x4, offset = 0x4, fixed_abs, tag = 'smem constant byte address 0x4 - core index']
  #allocation1 [shape = 'u32[144,128]{1,0:T(1,128)}', space=vmem, size = 0x12000, scoped, tag = 'internal scratch']
  #allocation2 [shape = 'f32[1,1]{1,0:T(1,128)S(1)}', space=vmem, size = 0x200, scoped, tag = 'scoped memory for tpu_custom_call.1']
  %s0 = inlined_call_operand.hbm [shape: f32[8,16], index: 0, kind: input, shape index: {}]
  %s1 = inlined_call_operand.hbm [shape: f32[32,16], index: 1, kind: input, shape index: {}]
  %s2 = inlined_call_operand.hbm [shape: f32[32,1], index: 2, kind: input, shape index: {}]
  %s3 = inlined_call_operand.hbm [shape: f32[32,1], index: 3, kind: input, shape index: {}]
  %s4 = inlined_call_operand.<no memory space> [shape: f32[1,1], index: 4, kind: input, shape index: {}]
  %s5 = inlined_call_operand.hbm [shape: f32[1,8], index: 5, kind: output, shape index: {}]
  %s6 = sld [smem:[#allocation0]]
  $region46: #{tpu_custom_call.1} parent=0
    _
  %s8 = ssub.s32 1, %s6
  %s9 = scalar_select 0, %s8, %s6
  %v10 = vstv %s4
  %11 = vst [vmem:[#allocation2] sm:$0x1] %v10
  $region1: #{tpu_custom_call.1} parent=0
    #allocation3 [shape = 'u8[4096]{0}', space=vmem, size = 0x1000, scoped, tag = 'input window, operand 0, single buffered']
    #allocation4 [shape = 's32[1]{0}', space=sflag, size = 0x4, scoped, tag = 'scoped memory for tpu_custom_call.1']
    #allocation5 [shape = 's32[1]{0}', space=sflag, size = 0x4, scoped, tag = 'scoped memory for tpu_custom_call.1']
    #allocation6 [shape = 'u8[16384]{0}', space=vmem, size = 0x4000, scoped, tag = 'input window, operand 1, single buffered']
    #allocation7 [shape = 's32[1]{0}', space=sflag, size = 0x4, scoped, tag = 'scoped memory for tpu_custom_call.1']
    #allocation8 [shape = 'u8[16384]{0}', space=vmem, size = 0x4000, scoped, tag = 'input window, operand 2, single buffered']
    #allocation9 [shape = 'u8[16384]{0}', space=vmem, size = 0x4000, scoped, tag = 'input window, operand 3, single buffered']
    #allocation10 [shape = 's32[1]{0}', space=sflag, size = 0x4, scoped, tag = 'scoped memory for tpu_custom_call.1']
    #allocation11 [shape = 'u8[512]{0}', space=vmem, size = 0x400, scoped, tag = 'output window, operand 0, single buffered']
    %12 = vsyncpa [#allocation4], 0
    %13 = vsyncpa [#allocation7], 0
    %14 = vsyncpa [#allocation10], 0
    %15 = vsyncpa [#allocation5], 0
    // Predicated region
    $region2: #{tpu_custom_call.1} parent=1 // pred_check
      _
    $region3: #{tpu_custom_call.1} parent=1 // pred_check_branch
      %17 = sbr.rel (0) target = $region5
    $region4: #{tpu_custom_call.1} parent=1 // pred_region
      %s19 = ssub.s32 128, 128
      %20 = vsyncadd [#allocation4], %s19
      %s22 = sshll.u32 [#allocation3], 4
      %s23 = int_to_ptr.vmem [resolvable:$true] %s22
      %25 = dma.hbm_to_vmem [thread:$0]  %s0, 128, %s23, [#allocation4]
    $region5: #{tpu_custom_call.1} parent=1 // pred_fallthru
      _
    // Predicated region
    $region6: #{tpu_custom_call.1} parent=1 // pred_check
      _
    $region7: #{tpu_custom_call.1} parent=1 // pred_check_branch
      %27 = sbr.rel (0) target = $region9
    $region8: #{tpu_custom_call.1} parent=1 // pred_region
      %s29 = ssub.s32 512, 512
      %30 = vsyncadd [#allocation7], %s29
      %s31 = sshll.u32 [#allocation6], 4
      %s32 = int_to_ptr.vmem [resolvable:$true] %s31
      %37 = dma.hbm_to_vmem [thread:$0]  %s1, 512, %s32, [#allocation7], 128, 128, 8
    $region9: #{tpu_custom_call.1} parent=1 // pred_fallthru
      _
    // Predicated region
    $region10: #{tpu_custom_call.1} parent=1 // pred_check
      _
    $region11: #{tpu_custom_call.1} parent=1 // pred_check_branch
      %39 = sbr.rel (0) target = $region13
    $region12: #{tpu_custom_call.1} parent=1 // pred_region
      %s41 = ssub.s32 512, 512
      %42 = vsyncadd [#allocation7], %s41
      %s43 = sshll.u32 [#allocation8], 4
      %s44 = int_to_ptr.vmem [resolvable:$true] %s43
      %49 = dma.hbm_to_vmem [thread:$0]  %s2, 512, %s44, [#allocation7], 128, 128, 8
    $region13: #{tpu_custom_call.1} parent=1 // pred_fallthru
      _
    // Predicated region
    $region14: #{tpu_custom_call.1} parent=1 // pred_check
      _
    $region15: #{tpu_custom_call.1} parent=1 // pred_check_branch
      %51 = sbr.rel (0) target = $region17
    $region16: #{tpu_custom_call.1} parent=1 // pred_region
      %s53 = ssub.s32 512, 512
      %54 = vsyncadd [#allocation10], %s53
      %s55 = sshll.u32 [#allocation9], 4
      %s56 = int_to_ptr.vmem [resolvable:$true] %s55
      %61 = dma.hbm_to_vmem [thread:$0]  %s3, 512, %s56, [#allocation10], 128, 128, 8
    $region17: #{tpu_custom_call.1} parent=1 // pred_fallthru
      _
    // Predicated region
    $region18: #{tpu_custom_call.1} parent=1 // pred_check
      _
    $region19: #{tpu_custom_call.1} parent=1 // pred_check_branch
      %63 = sbr.rel (0) target = $region21
    $region20: #{tpu_custom_call.1} parent=1 // pred_region
      _
    $region21: #{tpu_custom_call.1} parent=1 // pred_fallthru
      _
    // Predicated region
    $region22: #{tpu_custom_call.1} parent=1 // pred_check
      _
    $region23: #{tpu_custom_call.1} parent=1 // pred_check_branch
      %65 = sbr.rel (0) target = $region25
    $region24: #{tpu_custom_call.1} parent=1 // pred_region
      %66 = dma.done [#allocation4], 128
    $region25: #{tpu_custom_call.1} parent=1 // pred_fallthru
      _
    // Predicated region
    $region26: #{tpu_custom_call.1} parent=1 // pred_check
      _
    $region27: #{tpu_custom_call.1} parent=1 // pred_check_branch
      %68 = sbr.rel (0) target = $region29
    $region28: #{tpu_custom_call.1} parent=1 // pred_region
      %69 = dma.done [#allocation7], 512
    $region29: #{tpu_custom_call.1} parent=1 // pred_fallthru
      _
    // Predicated region
    $region30: #{tpu_custom_call.1} parent=1 // pred_check
      _
    $region31: #{tpu_custom_call.1} parent=1 // pred_check_branch
      %71 = sbr.rel (0) target = $region33
    $region32: #{tpu_custom_call.1} parent=1 // pred_region
      %72 = dma.done [#allocation7], 512
    $region33: #{tpu_custom_call.1} parent=1 // pred_fallthru
      _
    // Predicated region
    $region34: #{tpu_custom_call.1} parent=1 // pred_check
      _
    $region35: #{tpu_custom_call.1} parent=1 // pred_check_branch
      %74 = sbr.rel (0) target = $region37
    $region36: #{tpu_custom_call.1} parent=1 // pred_region
      %75 = dma.done [#allocation10], 512
    $region37: #{tpu_custom_call.1} parent=1 // pred_fallthru
      _
    %v76 = vld [vmem:[#allocation6] sm:$0xff]
    %v77 = vld [vmem:[#allocation6 + $0x8] sm:$0xff]
    %v78 = vld [vmem:[#allocation6 + $0x10] sm:$0xff]
    %v79 = vld [vmem:[#allocation6 + $0x18] sm:$0xff]
    %v80 = vld [vmem:[#allocation3] sm:$0xff]
    %v81 = vld [vmem:[#allocation8] sm:$0xff]
    %v82 = vld [vmem:[#allocation8 + $0x8] sm:$0xff]
    %v83 = vld [vmem:[#allocation8 + $0x10] sm:$0xff]
    %v84 = vld [vmem:[#allocation8 + $0x18] sm:$0xff]
    %86 = vset.pattern.permute.xlu0 0
    %87 = vperm.xlu0 %86, %v81
    %v88 = vpop.permute.xlu0 %87
    %91 = vset.pattern.permute.xlu0 0
    %92 = vperm.xlu0 %91, %v82
    %v93 = vpop.permute.xlu0 %92
    %96 = vset.pattern.permute.xlu0 0
    %97 = vperm.xlu0 %96, %v83
    %v98 = vpop.permute.xlu0 %97
    %101 = vset.pattern.permute.xlu0 0
    %102 = vperm.xlu0 %101, %v84
    %v103 = vpop.permute.xlu0 %102
    %vm105 = vcmask 130048
    %v107 = vsel %vm105, %v76, 0
    %v110 = vsel %vm105, %v77, 0
    %v113 = vsel %vm105, %v78, 0
    %v116 = vsel %vm105, %v79, 0
    %v119 = vsel %vm105, %v80, 0
    %121 = vmatprep.subr.mxu0 0.0
    %122 = vmatpush1.xpose.msra.mxu0 %v119
    %123 = vmatprep.subr.mxu0 0.0
    %124 = vmatpush1.xpose.msra.mxu0 0.0
    %125 = vmatprep.subr.mxu0 0.0
    %126 = vmatpush1.xpose.msra.mxu0 0.0
    %127 = vmatprep.subr.mxu0 0.0
    %128 = vmatpush1.xpose.msra.mxu0 0.0
    %129 = vmatprep.subr.mxu0 0.0
    %130 = vmatpush1.xpose.msra.mxu0 0.0
    %131 = vmatprep.subr.mxu0 0.0
    %132 = vmatpush1.xpose.msra.mxu0 0.0
    %133 = vmatprep.subr.mxu0 0.0
    %134 = vmatpush1.xpose.msra.mxu0 0.0
    %135 = vmatprep.subr.mxu0 0.0
    %136 = vmatpush1.xpose.msra.mxu0 0.0
    %137 = vmatprep.subr.mxu0 0.0
    %138 = vmatpush1.xpose.msra.mxu0 0.0
    %139 = vmatprep.subr.mxu0 0.0
    %140 = vmatpush1.xpose.msra.mxu0 0.0
    %141 = vmatprep.subr.mxu0 0.0
    %142 = vmatpush1.xpose.msra.mxu0 0.0
    %143 = vmatprep.subr.mxu0 0.0
    %144 = vmatpush1.xpose.msra.mxu0 0.0
    %145 = vmatprep.subr.mxu0 0.0
    %146 = vmatpush1.xpose.msra.mxu0 0.0
    %147 = vmatprep.subr.mxu0 0.0
    %148 = vmatpush1.xpose.msra.mxu0 0.0
    %149 = vmatprep.subr.mxu0 0.0
    %150 = vmatpush1.xpose.msra.mxu0 0.0
    %151 = vmatprep.subr.mxu0 0.0
    %152 = vmatpush1.xpose.msra.mxu0 0.0
    %153 = vmatprep.subr.mxu0 0.0
    %154 = vmatpush1.xpose.msra.mxu0 0.0
    %155 = vmatprep.subr.mxu0 0.0
    %156 = vmatpush1.xpose.msra.mxu0 0.0
    %157 = vmatprep.subr.mxu0 0.0
    %158 = vmatpush1.xpose.msra.mxu0 0.0
    %159 = vmatprep.subr.mxu0 0.0
    %160 = vmatpush1.xpose.msra.mxu0 0.0
    %161 = vmatprep.subr.mxu0 0.0
    %162 = vmatpush1.xpose.msra.mxu0 0.0
    %163 = vmatprep.subr.mxu0 0.0
    %164 = vmatpush1.xpose.msra.mxu0 0.0
    %165 = vmatprep.subr.mxu0 0.0
    %166 = vmatpush1.xpose.msra.mxu0 0.0
    %167 = vmatprep.subr.mxu0 0.0
    %168 = vmatpush1.xpose.msra.mxu0 0.0
    %169 = vmatprep.subr.mxu0 0.0
    %170 = vmatpush1.xpose.msra.mxu0 0.0
    %171 = vmatprep.subr.mxu0 0.0
    %172 = vmatpush1.xpose.msra.mxu0 0.0
    %173 = vmatprep.subr.mxu0 0.0
    %174 = vmatpush1.xpose.msra.mxu0 0.0
    %175 = vmatprep.subr.mxu0 0.0
    %176 = vmatpush1.xpose.msra.mxu0 0.0
    %177 = vmatprep.subr.mxu0 0.0
    %178 = vmatpush1.xpose.msra.mxu0 0.0
    %179 = vmatprep.subr.mxu0 0.0
    %180 = vmatpush1.xpose.msra.mxu0 0.0
    %181 = vmatprep.subr.mxu0 0.0
    %182 = vmatpush1.xpose.msra.mxu0 0.0
    %183 = vmatprep.subr.mxu0 0.0
    %184 = vmatpush1.xpose.msra.mxu0 0.0
    %185 = vmatprep.mubr.f32.mxu0 0.0
    %186 = vmatmul.mubr.f32.gmra.mrb[0].mxu0 %v107
    %v187 = vpop.f32.mrb[0].mxu0
    %v188 = vadd.f32 %v88, %v187
    %v189 = vpop.f32.mrb[0].mxu0
    %190 = vmatprep.mubr.f32.mxu0 0.0
    %191 = vmatmul.mubr.f32.gmra.mrb[0].mxu0 %v110
    %v192 = vpop.f32.mrb[0].mxu0
    %v193 = vadd.f32 %v93, %v192
    %v194 = vpop.f32.mrb[0].mxu0
    %195 = vmatprep.mubr.f32.mxu0 0.0
    %196 = vmatmul.mubr.f32.gmra.mrb[0].mxu0 %v113
    %v197 = vpop.f32.mrb[0].mxu0
    %v198 = vadd.f32 %v98, %v197
    %v199 = vpop.f32.mrb[0].mxu0
    %200 = vmatprep.mubr.f32.mxu0 0.0
    %201 = vmatmul.mubr.f32.gmra.mrb[0].mxu0 %v116
    %v202 = vpop.f32.mrb[0].mxu0
    %v203 = vadd.f32 %v103, %v202
    %v204 = vpop.f32.mrb[0].mxu0
    %205 = vdwg.mxu0
    %v206 = vmax.f32 %v188, 0.0
    %v207 = vmax.f32 %v193, 0.0
    %v208 = vmax.f32 %v198, 0.0
    %v209 = vmax.f32 %v203, 0.0
    %v210 = vld [vmem:[#allocation9] sm:$0xff]
    %v211 = vld [vmem:[#allocation9 + $0x8] sm:$0xff]
    %v212 = vld [vmem:[#allocation9 + $0x10] sm:$0xff]
    %v213 = vld [vmem:[#allocation9 + $0x18] sm:$0xff]
    %215 = vset.pattern.permute.xlu0 0
    %216 = vperm.xlu0 %215, %v210
    %v217 = vpop.permute.xlu0 %216
    %220 = vset.pattern.permute.xlu0 0
    %221 = vperm.xlu0 %220, %v211
    %v222 = vpop.permute.xlu0 %221
    %225 = vset.pattern.permute.xlu0 0
    %226 = vperm.xlu0 %225, %v212
    %v227 = vpop.permute.xlu0 %226
    %230 = vset.pattern.permute.xlu0 0
    %231 = vperm.xlu0 %230, %v213
    %v232 = vpop.permute.xlu0 %231
    %v234 = vmul.f32 %v206, %v217
    %v235 = vmul.f32 %v207, %v222
    %v236 = vmul.f32 %v208, %v227
    %v237 = vmul.f32 %v209, %v232
    %vm238 = vcmask 64512
    %v239 = vsel %vm238, %v234, 0.0
    %v240 = vsel %vm238, %v235, 0.0
    %v241 = vadd.f32 %v239, %v240
    %v242 = vsel %vm238, %v236, 0.0
    %v243 = vadd.f32 %v241, %v242
    %v244 = vsel %vm238, %v237, 0.0
    %v245 = vadd.f32 %v243, %v244
    %v246 = vrot.slane %v245, 4
    %v247 = vadd.f32 %v245, %v246
    %v248 = vrot.slane %v247, 2
    %v249 = vadd.f32 %v247, %v248
    %v250 = vrot.slane %v249, 1
    %v251 = vadd.f32 %v249, %v250
    %v252 = vld [vmem:[#allocation2] sm:$0x1]
    %254 = vset.pattern.permute.xlu0 0
    %255 = vperm.xlu0 %254, %v252
    %v256 = vpop.permute.xlu0 %255
    %v258 = vlaneseq
    %v259 = vshrl.u32 %v258, 7
    %v260 = vsub.s32 0, %v259
    %v261 = vrot.slane %v256, %v260
    %v262 = vadd.f32 %v251, %v261
    %vm263 = vcmask 57344
    %264 = vst.msk [vmem:[#allocation11] sm:$0x1] %vm263, %v262
    // Predicated region
    $region38: #{tpu_custom_call.1} parent=1 // pred_check
      _
    $region39: #{tpu_custom_call.1} parent=1 // pred_check_branch
      %266 = sbr.rel (0) target = $region41
    $region40: #{tpu_custom_call.1} parent=1 // pred_region
      %s268 = ssub.s32 16, 16
      %269 = vsyncadd [#allocation5], %s268
      %s271 = sshll.u32 [#allocation11], 4
      %s272 = int_to_ptr.vmem [resolvable:$true] %s271
      %274 = dma.vmem_to_hbm [thread:$0]  %s272, 16, %s5, [#allocation5]
    $region41: #{tpu_custom_call.1} parent=1 // pred_fallthru
      _
    // Predicated region
    $region42: #{tpu_custom_call.1} parent=1 // pred_check
      _
    $region43: #{tpu_custom_call.1} parent=1 // pred_check_branch
      %276 = sbr.rel (0) target = $region45
    $region44: #{tpu_custom_call.1} parent=1 // pred_region
      %277 = dma.done [#allocation5], 16
    $region45: #{tpu_custom_call.1} parent=1 // pred_fallthru
      _
    %278 = vsyncpa [#allocation4], 1
    %279 = vsyncpa [#allocation7], 1
    %280 = vsyncpa [#allocation10], 1
    %281 = vsyncpa [#allocation5], 1

</llo_original>
